<compile_context>
chip_gen: v7x
topology: tpu7x:2x2x1
jax: 0.10.0
libtpu: 0.0.40
codegen_flags: <defaults>
</compile_context>

<pallas_src>
import jax
import jax.numpy as jnp
from jax.experimental import pallas as pl
from jax.experimental.pallas import tpu as pltpu

LANES = 128
SUBLANES = 8
TILE_ROWS = 512                 # 512 * 128 = 65536 edges per grid step

MV_COEF = 0.56
LINEBASE_COEF = 0.5
COEF0 = LINEBASE_COEF * 0.8 / MV_COEF     # folded constant
COEF1 = LINEBASE_COEF * 0.01 / MV_COEF    # folded constant
N_RADII = 119                   # length of ase.data.covalent_radii
# TODO(synk): the real module loads ase.data.covalent_radii; here we use a
#             deterministic synthetic radii table of the same shape.

_SMEM = pl.BlockSpec(memory_space=pltpu.MemorySpace.SMEM)


# ----------------------------- kernel-side helpers --------------------------
def _recip(x):
    """1/x via EUP approx reciprocal + one Newton step (~f32 accuracy)."""
    inv = pl.reciprocal(x, approx=True)
    return inv * (2.0 - x * inv)


def _lj_pot(pin0, pin1, r0, r, w1, b1, w2, b2, w3, b3):
    """Potential for one dense (rows, 128) slab.

    pin0/pin1/r0/r: (Rt, 128) f32 slabs.  w*/b*: flat f32 SMEM refs.
    Layer-3 params arrive pre-scaled: row 0 by 4 (the 4*eps factor), rows
    3..5 by 0.001 (the n_3/n1/n2 scales).
    """
    # layer 1: 2 -> 6, ReLU  (scalar-broadcast VPU FMAs)
    h1 = [jnp.maximum(w1[2 * j] * pin0 + w1[2 * j + 1] * pin1 + b1[j], 0.0)
          for j in range(6)]
    # layer 2: 6 -> 6, ReLU
    h2 = []
    for j in range(6):
        acc = w2[6 * j] * h1[0] + b2[j]
        for k in range(1, 6):
            acc = acc + w2[6 * j + k] * h1[k]
        h2.append(jnp.maximum(acc, 0.0))
    # layer 3: 6 -> 6, |.|
    p = []
    for j in range(6):
        acc = w3[6 * j] * h2[0] + b3[j]
        for k in range(1, 6):
            acc = acc + w3[6 * j + k] * h2[k]
        p.append(jnp.abs(acc))
    eps4, kk, c, n_3, n1, n2 = p          # eps4 = 4*eps; n_* already *1e-3

    # LJ formula.  Note: for pathologically small r, s12 can overflow to inf
    # (inf - finite = inf -> clamped to 10), matching the reference behavior.
    inv_r = _recip(r)
    sigma = (COEF0 + COEF1 * kk) * r0 * inv_r
    s2 = sigma * sigma
    s6 = s2 * s2 * s2
    s12 = s6 * s6
    cbrt_r = jnp.exp(jnp.log(r) * (1.0 / 3.0))          # EUP exp/log
    pot = eps4 * (s12 - s6) + n_3 * cbrt_r + n2 * (r * r)
    pot = jnp.minimum(pot, 10.0)
    return pot - n1 * r + c


def _lj_r_kernel(x_ref, w1, b1, w2, b2, w3, b3, out_ref):
    # x_ref: (4, Rt, 128)  channels = [cen+nei, cen*nei, 2*radii[cen], r]
    out_ref[...] = _lj_pot(x_ref[0], x_ref[1], x_ref[2], x_ref[3],
                           w1, b1, w2, b2, w3, b3)


def _lj_xyz_kernel(x_ref, w1, b1, w2, b2, w3, b3, out_ref):
    # x_ref: (6, Rt, 128)  channels = [cen+nei, cen*nei, 2*radii[cen],
    #                                  rx^2, ry^2, rz^2]
    rx2 = x_ref[3]
    ry2 = x_ref[4]
    rz2 = x_ref[5]
    rr = rx2 + ry2 + rz2
    pot = _lj_pot(x_ref[0], x_ref[1], x_ref[2], rr, w1, b1, w2, b2, w3, b3)
    scale = pot * _recip(rr)
    out_ref[0] = scale * rx2
    out_ref[1] = scale * ry2
    out_ref[2] = scale * rz2


# ----------------------------- host-side helpers ----------------------------
def _flatten_params(params):
    """Flatten MLP params to 1-D f32 arrays; fold 4*eps and 1e-3 into layer 3."""
    (w1, b1), (w2, b2), (w3, b3) = params
    scale3 = jnp.array([4.0, 1.0, 1.0, 1e-3, 1e-3, 1e-3], jnp.float32)
    w1f = w1.reshape(-1).astype(jnp.float32)
    b1f = b1.reshape(-1).astype(jnp.float32)
    w2f = w2.reshape(-1).astype(jnp.float32)
    b2f = b2.reshape(-1).astype(jnp.float32)
    w3f = (w3.astype(jnp.float32) * scale3[:, None]).reshape(-1)
    b3f = b3.reshape(-1).astype(jnp.float32) * scale3
    return w1f, b1f, w2f, b2f, w3f, b3f


def _tiling(n):
    rows = pl.cdiv(n, LANES)
    rows = pl.cdiv(rows, SUBLANES) * SUBLANES
    tile_rows = min(TILE_ROWS, rows)
    rows = pl.cdiv(rows, tile_rows) * tile_rows
    return rows, tile_rows, rows * LANES


def _pack(channels, pad_vals, n, n_pad, rows):
    """Pad each per-edge channel and stack into a (C, rows, 128) slab."""
    pad = n_pad - n
    cols = []
    for x, cval in zip(channels, pad_vals):
        x = x.reshape(-1).astype(jnp.float32)
        if pad:
            x = jnp.pad(x, (0, pad), constant_values=cval)
        cols.append(x)
    return jnp.stack(cols, axis=0).reshape(len(cols), rows, LANES)


def _forward_r_pallas(params, radii, cen, nei, r):
    """Equivalent of LJ._forward_r for r of shape (N, 1).  Returns (N, 1)."""
    wflat = _flatten_params(params)
    n = r.shape[0]
    rows, tile_rows, n_pad = _tiling(n)

    cenf = cen.astype(jnp.float32)
    neif = nei.astype(jnp.float32)
    # torch arg-swap: _forward_r's `nei` parameter is the caller's `cen`,
    # so r0 = 2 * radii[cen].
    r0 = 2.0 * jnp.take(radii, cen)
    chan = _pack([cenf + neif, cenf * neif, r0, r],
                 [0.0, 0.0, 1.0, 1.0], n, n_pad, rows)

    out = pl.pallas_call(
        _lj_r_kernel,
        out_shape=jax.ShapeDtypeStruct((rows, LANES), jnp.float32),
        grid=(rows // tile_rows,),
        in_specs=[pl.BlockSpec((4, tile_rows, LANES), lambda i: (0, i, 0))]
                 + [_SMEM] * 6,
        out_specs=pl.BlockSpec((tile_rows, LANES), lambda i: (i, 0)),
        compiler_params=pltpu.CompilerParams(
            dimension_semantics=("parallel",)),
    )(chan, *wflat)

    return out.reshape(n_pad)[:n].reshape(n, 1)


def _forward_xyz_pallas(params, radii, cen, nei, rvec):
    """Equivalent of LJ._forward_xyz for rvec of shape (N, 3).  Returns (N, 3)."""
    wflat = _flatten_params(params)
    n = rvec.shape[0]
    rows, tile_rows, n_pad = _tiling(n)

    cenf = cen.astype(jnp.float32)
    neif = nei.astype(jnp.float32)
    r0 = 2.0 * jnp.take(radii, cen)
    r2 = (rvec.astype(jnp.float32) ** 2).T            # (3, N)
    chan = _pack([cenf + neif, cenf * neif, r0, r2[0], r2[1], r2[2]],
                 [0.0, 0.0, 1.0, 1.0, 1.0, 1.0], n, n_pad, rows)

    out = pl.pallas_call(
        _lj_xyz_kernel,
        out_shape=jax.ShapeDtypeStruct((3, rows, LANES), jnp.float32),
        grid=(rows // tile_rows,),
        in_specs=[pl.BlockSpec((6, tile_rows, LANES), lambda i: (0, i, 0))]
                 + [_SMEM] * 6,
        out_specs=pl.BlockSpec((3, tile_rows, LANES), lambda i: (0, i, 0)),
        compiler_params=pltpu.CompilerParams(
            dimension_semantics=("parallel",)),
    )(chan, *wflat)

    return out.reshape(3, n_pad)[:, :n].T             # (N, 3)


def lj_forward(params, radii, cen, nei, r, cutoff=5.0):
    """Mirror of LJ.forward.  r: (N,)/(N,1) -> (N,1);  r: (N,3) -> (N,3)."""
    del cutoff  # stored but unused in the PyTorch forward
    cen = cen.reshape(-1)
    nei = nei.reshape(-1)
    if r.ndim == 1 or (r.ndim == 2 and r.shape[1] == 1):
        return _forward_r_pallas(params, radii, cen, nei, r.reshape(-1, 1))
    elif r.ndim == 2 and r.shape[1] == 3:
        return _forward_xyz_pallas(params, radii, cen, nei, r)
    else:
        raise NotImplementedError(
            "r must be distance (N,)/(N,1) or distance_vec (N,3)")


# ----------------------------- reference (plain JAX) ------------------------
def _forward_r_ref(params, radii, cen, nei, r):
    (w1, b1), (w2, b2), (w3, b3) = params
    cenf = cen.astype(jnp.float32)
    neif = nei.astype(jnp.float32)
    pin = jnp.stack([cenf + neif, cenf * neif], axis=1)             # (N, 2)
    r0 = (2.0 * jnp.take(radii, cen)).reshape(-1, 1)
    h = jnp.maximum(pin @ w1.T + b1.T, 0.0)
    h = jnp.maximum(h @ w2.T + b2.T, 0.0)
    p = jnp.abs(h @ w3.T + b3.T)                                    # (N, 6)
    eps, kk, c, n_3, n1, n2 = [p[:, i:i + 1] for i in range(6)]
    n_3, n1, n2 = 0.001 * n_3, 0.001 * n1, 0.001 * n2
    sigma = (LINEBASE_COEF * (0.8 + 0.01 * kk) * r0 / MV_COEF) / r
    s2 = sigma * sigma
    s6 = s2 * s2 * s2
    s12 = s6 * s6
    pot = 4.0 * eps * (s12 - s6) + n_3 * jnp.power(r, 1.0 / 3.0) + n2 * r * r
    pot = jnp.minimum(pot, 10.0)
    return pot - n1 * r + c


def lj_forward_ref(params, radii, cen, nei, r):
    cen = cen.reshape(-1)
    nei = nei.reshape(-1)
    if r.ndim == 1 or (r.ndim == 2 and r.shape[1] == 1):
        return _forward_r_ref(params, radii, cen, nei, r.reshape(-1, 1))
    rr = jnp.sum(r ** 2, axis=1, keepdims=True)
    pot = _forward_r_ref(params, radii, cen, nei, rr)
    r2 = r ** 2
    return pot * r2 / jnp.sum(r2, axis=1, keepdims=True)


# ----------------------------- parameter setup ------------------------------
def init_params(key):
    """Deterministic init mimicking nn.Linear defaults (shapes 2->6->6->6)."""
    def linear(kw, kb, fan_in, fan_out):
        bound = 1.0 / (fan_in ** 0.5)
        w = jax.random.uniform(kw, (fan_out, fan_in), jnp.float32, -bound, bound)
        b = jax.random.uniform(kb, (fan_out, 1), jnp.float32, -bound, bound)
        return w, b
    ks = jax.random.split(key, 6)
    return (linear(ks[0], ks[1], 2, 6),
            linear(ks[2], ks[3], 6, 6),
            linear(ks[4], ks[5], 6, 6))


if __name__ == "__main__":
    key = jax.random.PRNGKey(0)
    kp, kc, kn, kr, kv = jax.random.split(key, 5)

    params = init_params(kp)
    # synthetic, deterministic stand-in for ase covalent radii (Angstrom-ish)
    radii = (0.3 + 0.02 * jnp.arange(N_RADII)).astype(jnp.float32)

    N = 256
    cen = jax.random.randint(kc, (N,), 1, 20, dtype=jnp.int32)     # atomic numbers
    nei = jax.random.randint(kn, (N,), 1, 20, dtype=jnp.int32)
    r = jax.random.uniform(kr, (N, 1), jnp.float32, 0.8, 5.0)      # distances
    r_vec = jax.random.uniform(kv, (N, 3), jnp.float32, 0.3, 2.0)  # dist vecs

    # scalar-distance path
    pot = jax.block_until_ready(lj_forward(params, radii, cen, nei, r))
    ref = lj_forward_ref(params, radii, cen, nei, r)
    assert pot.shape == (N, 1)
    assert bool(jnp.all(jnp.isfinite(pot)))
    assert bool(jnp.allclose(pot, ref, rtol=2e-3, atol=2e-3))

    # distance-vector path (fused rr / potential / rescale kernel)
    pot3 = jax.block_until_ready(lj_forward(params, radii, cen, nei, r_vec))
    ref3 = lj_forward_ref(params, radii, cen, nei, r_vec)
    assert pot3.shape == (N, 3)
    assert bool(jnp.all(jnp.isfinite(pot3)))
    assert bool(jnp.allclose(pot3, ref3, rtol=2e-3, atol=2e-3))

    print("KERNEL_OK")
</pallas_src>

<mosaic_0001>
module attributes {stable_mosaic.version = 11 : i64} {
  func.func @_lj_r_kernel(%arg0: i32, %arg1: memref<4x8x128xf32, #tpu.memory_space<vmem>>, %arg2: memref<12xf32, #tpu.memory_space<smem>>, %arg3: memref<6xf32, #tpu.memory_space<smem>>, %arg4: memref<36xf32, #tpu.memory_space<smem>>, %arg5: memref<6xf32, #tpu.memory_space<smem>>, %arg6: memref<36xf32, #tpu.memory_space<smem>>, %arg7: memref<6xf32, #tpu.memory_space<smem>>, %arg8: memref<8x128xf32, #tpu.memory_space<vmem>>) attributes {dimension_semantics = [#tpu.dimension_semantics<parallel>], iteration_bounds = array<i64: 1>, scalar_prefetch = 0 : i64, scratch_operands = 0 : i64, tpu.core_type = #tpu.core_type<tc>, window_params = [{transform_indices = @transform_0, window_bounds = array<i64: 4, 8, 128>}, {transform_indices = @transform_1, window_bounds = array<i64: 12>}, {transform_indices = @transform_2, window_bounds = array<i64: 6>}, {transform_indices = @transform_3, window_bounds = array<i64: 36>}, {transform_indices = @transform_4, window_bounds = array<i64: 6>}, {transform_indices = @transform_5, window_bounds = array<i64: 36>}, {transform_indices = @transform_6, window_bounds = array<i64: 6>}, {transform_indices = @transform_7, window_bounds = array<i64: 8, 128>}]} {
    %c0 = arith.constant 0 : index
    %c0_0 = arith.constant 0 : index
    %c0_1 = arith.constant 0 : index
    %0 = vector.load %arg1[%c0, %c0_0, %c0_1] : memref<4x8x128xf32, #tpu.memory_space<vmem>>, vector<1x8x128xf32>
    %1 = vector.shape_cast %0 : vector<1x8x128xf32> to vector<8x128xf32>
    %c1 = arith.constant 1 : index
    %c0_2 = arith.constant 0 : index
    %c0_3 = arith.constant 0 : index
    %2 = vector.load %arg1[%c1, %c0_2, %c0_3] : memref<4x8x128xf32, #tpu.memory_space<vmem>>, vector<1x8x128xf32>
    %3 = vector.shape_cast %2 : vector<1x8x128xf32> to vector<8x128xf32>
    %c2 = arith.constant 2 : index
    %c0_4 = arith.constant 0 : index
    %c0_5 = arith.constant 0 : index
    %4 = vector.load %arg1[%c2, %c0_4, %c0_5] : memref<4x8x128xf32, #tpu.memory_space<vmem>>, vector<1x8x128xf32>
    %5 = vector.shape_cast %4 : vector<1x8x128xf32> to vector<8x128xf32>
    %c3 = arith.constant 3 : index
    %c0_6 = arith.constant 0 : index
    %c0_7 = arith.constant 0 : index
    %6 = vector.load %arg1[%c3, %c0_6, %c0_7] : memref<4x8x128xf32, #tpu.memory_space<vmem>>, vector<1x8x128xf32>
    %7 = vector.shape_cast %6 : vector<1x8x128xf32> to vector<8x128xf32>
    %c0_8 = arith.constant 0 : index
    %8 = memref.load %arg2[%c0_8] : memref<12xf32, #tpu.memory_space<smem>>
    %9 = vector.broadcast %8 : f32 to vector<8x128xf32>
    %10 = arith.mulf %9, %1 : vector<8x128xf32>
    %c1_9 = arith.constant 1 : index
    %11 = memref.load %arg2[%c1_9] : memref<12xf32, #tpu.memory_space<smem>>
    %12 = vector.broadcast %11 : f32 to vector<8x128xf32>
    %13 = arith.mulf %12, %3 : vector<8x128xf32>
    %14 = arith.addf %10, %13 : vector<8x128xf32>
    %c0_10 = arith.constant 0 : index
    %15 = memref.load %arg3[%c0_10] : memref<6xf32, #tpu.memory_space<smem>>
    %16 = vector.broadcast %15 : f32 to vector<8x128xf32>
    %17 = arith.addf %14, %16 : vector<8x128xf32>
    %cst = arith.constant 0.000000e+00 : f32
    %18 = vector.broadcast %cst : f32 to vector<8x128xf32>
    %19 = arith.maximumf %17, %18 : vector<8x128xf32>
    %c2_11 = arith.constant 2 : index
    %20 = memref.load %arg2[%c2_11] : memref<12xf32, #tpu.memory_space<smem>>
    %21 = vector.broadcast %20 : f32 to vector<8x128xf32>
    %22 = arith.mulf %21, %1 : vector<8x128xf32>
    %c3_12 = arith.constant 3 : index
    %23 = memref.load %arg2[%c3_12] : memref<12xf32, #tpu.memory_space<smem>>
    %24 = vector.broadcast %23 : f32 to vector<8x128xf32>
    %25 = arith.mulf %24, %3 : vector<8x128xf32>
    %26 = arith.addf %22, %25 : vector<8x128xf32>
    %c1_13 = arith.constant 1 : index
    %27 = memref.load %arg3[%c1_13] : memref<6xf32, #tpu.memory_space<smem>>
    %28 = vector.broadcast %27 : f32 to vector<8x128xf32>
    %29 = arith.addf %26, %28 : vector<8x128xf32>
    %cst_14 = arith.constant 0.000000e+00 : f32
    %30 = vector.broadcast %cst_14 : f32 to vector<8x128xf32>
    %31 = arith.maximumf %29, %30 : vector<8x128xf32>
    %c4 = arith.constant 4 : index
    %32 = memref.load %arg2[%c4] : memref<12xf32, #tpu.memory_space<smem>>
    %33 = vector.broadcast %32 : f32 to vector<8x128xf32>
    %34 = arith.mulf %33, %1 : vector<8x128xf32>
    %c5 = arith.constant 5 : index
    %35 = memref.load %arg2[%c5] : memref<12xf32, #tpu.memory_space<smem>>
    %36 = vector.broadcast %35 : f32 to vector<8x128xf32>
    %37 = arith.mulf %36, %3 : vector<8x128xf32>
    %38 = arith.addf %34, %37 : vector<8x128xf32>
    %c2_15 = arith.constant 2 : index
    %39 = memref.load %arg3[%c2_15] : memref<6xf32, #tpu.memory_space<smem>>
    %40 = vector.broadcast %39 : f32 to vector<8x128xf32>
    %41 = arith.addf %38, %40 : vector<8x128xf32>
    %cst_16 = arith.constant 0.000000e+00 : f32
    %42 = vector.broadcast %cst_16 : f32 to vector<8x128xf32>
    %43 = arith.maximumf %41, %42 : vector<8x128xf32>
    %c6 = arith.constant 6 : index
    %44 = memref.load %arg2[%c6] : memref<12xf32, #tpu.memory_space<smem>>
    %45 = vector.broadcast %44 : f32 to vector<8x128xf32>
    %46 = arith.mulf %45, %1 : vector<8x128xf32>
    %c7 = arith.constant 7 : index
    %47 = memref.load %arg2[%c7] : memref<12xf32, #tpu.memory_space<smem>>
    %48 = vector.broadcast %47 : f32 to vector<8x128xf32>
    %49 = arith.mulf %48, %3 : vector<8x128xf32>
    %50 = arith.addf %46, %49 : vector<8x128xf32>
    %c3_17 = arith.constant 3 : index
    %51 = memref.load %arg3[%c3_17] : memref<6xf32, #tpu.memory_space<smem>>
    %52 = vector.broadcast %51 : f32 to vector<8x128xf32>
    %53 = arith.addf %50, %52 : vector<8x128xf32>
    %cst_18 = arith.constant 0.000000e+00 : f32
    %54 = vector.broadcast %cst_18 : f32 to vector<8x128xf32>
    %55 = arith.maximumf %53, %54 : vector<8x128xf32>
    %c8 = arith.constant 8 : index
    %56 = memref.load %arg2[%c8] : memref<12xf32, #tpu.memory_space<smem>>
    %57 = vector.broadcast %56 : f32 to vector<8x128xf32>
    %58 = arith.mulf %57, %1 : vector<8x128xf32>
    %c9 = arith.constant 9 : index
    %59 = memref.load %arg2[%c9] : memref<12xf32, #tpu.memory_space<smem>>
    %60 = vector.broadcast %59 : f32 to vector<8x128xf32>
    %61 = arith.mulf %60, %3 : vector<8x128xf32>
    %62 = arith.addf %58, %61 : vector<8x128xf32>
    %c4_19 = arith.constant 4 : index
    %63 = memref.load %arg3[%c4_19] : memref<6xf32, #tpu.memory_space<smem>>
    %64 = vector.broadcast %63 : f32 to vector<8x128xf32>
    %65 = arith.addf %62, %64 : vector<8x128xf32>
    %cst_20 = arith.constant 0.000000e+00 : f32
    %66 = vector.broadcast %cst_20 : f32 to vector<8x128xf32>
    %67 = arith.maximumf %65, %66 : vector<8x128xf32>
    %c10 = arith.constant 10 : index
    %68 = memref.load %arg2[%c10] : memref<12xf32, #tpu.memory_space<smem>>
    %69 = vector.broadcast %68 : f32 to vector<8x128xf32>
    %70 = arith.mulf %69, %1 : vector<8x128xf32>
    %c11 = arith.constant 11 : index
    %71 = memref.load %arg2[%c11] : memref<12xf32, #tpu.memory_space<smem>>
    %72 = vector.broadcast %71 : f32 to vector<8x128xf32>
    %73 = arith.mulf %72, %3 : vector<8x128xf32>
    %74 = arith.addf %70, %73 : vector<8x128xf32>
    %c5_21 = arith.constant 5 : index
    %75 = memref.load %arg3[%c5_21] : memref<6xf32, #tpu.memory_space<smem>>
    %76 = vector.broadcast %75 : f32 to vector<8x128xf32>
    %77 = arith.addf %74, %76 : vector<8x128xf32>
    %cst_22 = arith.constant 0.000000e+00 : f32
    %78 = vector.broadcast %cst_22 : f32 to vector<8x128xf32>
    %79 = arith.maximumf %77, %78 : vector<8x128xf32>
    %c0_23 = arith.constant 0 : index
    %80 = memref.load %arg4[%c0_23] : memref<36xf32, #tpu.memory_space<smem>>
    %81 = vector.broadcast %80 : f32 to vector<8x128xf32>
    %82 = arith.mulf %81, %19 : vector<8x128xf32>
    %c0_24 = arith.constant 0 : index
    %83 = memref.load %arg5[%c0_24] : memref<6xf32, #tpu.memory_space<smem>>
    %84 = vector.broadcast %83 : f32 to vector<8x128xf32>
    %85 = arith.addf %82, %84 : vector<8x128xf32>
    %c1_25 = arith.constant 1 : index
    %86 = memref.load %arg4[%c1_25] : memref<36xf32, #tpu.memory_space<smem>>
    %87 = vector.broadcast %86 : f32 to vector<8x128xf32>
    %88 = arith.mulf %87, %31 : vector<8x128xf32>
    %89 = arith.addf %85, %88 : vector<8x128xf32>
    %c2_26 = arith.constant 2 : index
    %90 = memref.load %arg4[%c2_26] : memref<36xf32, #tpu.memory_space<smem>>
    %91 = vector.broadcast %90 : f32 to vector<8x128xf32>
    %92 = arith.mulf %91, %43 : vector<8x128xf32>
    %93 = arith.addf %89, %92 : vector<8x128xf32>
    %c3_27 = arith.constant 3 : index
    %94 = memref.load %arg4[%c3_27] : memref<36xf32, #tpu.memory_space<smem>>
    %95 = vector.broadcast %94 : f32 to vector<8x128xf32>
    %96 = arith.mulf %95, %55 : vector<8x128xf32>
    %97 = arith.addf %93, %96 : vector<8x128xf32>
    %c4_28 = arith.constant 4 : index
    %98 = memref.load %arg4[%c4_28] : memref<36xf32, #tpu.memory_space<smem>>
    %99 = vector.broadcast %98 : f32 to vector<8x128xf32>
    %100 = arith.mulf %99, %67 : vector<8x128xf32>
    %101 = arith.addf %97, %100 : vector<8x128xf32>
    %c5_29 = arith.constant 5 : index
    %102 = memref.load %arg4[%c5_29] : memref<36xf32, #tpu.memory_space<smem>>
    %103 = vector.broadcast %102 : f32 to vector<8x128xf32>
    %104 = arith.mulf %103, %79 : vector<8x128xf32>
    %105 = arith.addf %101, %104 : vector<8x128xf32>
    %cst_30 = arith.constant 0.000000e+00 : f32
    %106 = vector.broadcast %cst_30 : f32 to vector<8x128xf32>
    %107 = arith.maximumf %105, %106 : vector<8x128xf32>
    %c6_31 = arith.constant 6 : index
    %108 = memref.load %arg4[%c6_31] : memref<36xf32, #tpu.memory_space<smem>>
    %109 = vector.broadcast %108 : f32 to vector<8x128xf32>
    %110 = arith.mulf %109, %19 : vector<8x128xf32>
    %c1_32 = arith.constant 1 : index
    %111 = memref.load %arg5[%c1_32] : memref<6xf32, #tpu.memory_space<smem>>
    %112 = vector.broadcast %111 : f32 to vector<8x128xf32>
    %113 = arith.addf %110, %112 : vector<8x128xf32>
    %c7_33 = arith.constant 7 : index
    %114 = memref.load %arg4[%c7_33] : memref<36xf32, #tpu.memory_space<smem>>
    %115 = vector.broadcast %114 : f32 to vector<8x128xf32>
    %116 = arith.mulf %115, %31 : vector<8x128xf32>
    %117 = arith.addf %113, %116 : vector<8x128xf32>
    %c8_34 = arith.constant 8 : index
    %118 = memref.load %arg4[%c8_34] : memref<36xf32, #tpu.memory_space<smem>>
    %119 = vector.broadcast %118 : f32 to vector<8x128xf32>
    %120 = arith.mulf %119, %43 : vector<8x128xf32>
    %121 = arith.addf %117, %120 : vector<8x128xf32>
    %c9_35 = arith.constant 9 : index
    %122 = memref.load %arg4[%c9_35] : memref<36xf32, #tpu.memory_space<smem>>
    %123 = vector.broadcast %122 : f32 to vector<8x128xf32>
    %124 = arith.mulf %123, %55 : vector<8x128xf32>
    %125 = arith.addf %121, %124 : vector<8x128xf32>
    %c10_36 = arith.constant 10 : index
    %126 = memref.load %arg4[%c10_36] : memref<36xf32, #tpu.memory_space<smem>>
    %127 = vector.broadcast %126 : f32 to vector<8x128xf32>
    %128 = arith.mulf %127, %67 : vector<8x128xf32>
    %129 = arith.addf %125, %128 : vector<8x128xf32>
    %c11_37 = arith.constant 11 : index
    %130 = memref.load %arg4[%c11_37] : memref<36xf32, #tpu.memory_space<smem>>
    %131 = vector.broadcast %130 : f32 to vector<8x128xf32>
    %132 = arith.mulf %131, %79 : vector<8x128xf32>
    %133 = arith.addf %129, %132 : vector<8x128xf32>
    %cst_38 = arith.constant 0.000000e+00 : f32
    %134 = vector.broadcast %cst_38 : f32 to vector<8x128xf32>
    %135 = arith.maximumf %133, %134 : vector<8x128xf32>
    %c12 = arith.constant 12 : index
    %136 = memref.load %arg4[%c12] : memref<36xf32, #tpu.memory_space<smem>>
    %137 = vector.broadcast %136 : f32 to vector<8x128xf32>
    %138 = arith.mulf %137, %19 : vector<8x128xf32>
    %c2_39 = arith.constant 2 : index
    %139 = memref.load %arg5[%c2_39] : memref<6xf32, #tpu.memory_space<smem>>
    %140 = vector.broadcast %139 : f32 to vector<8x128xf32>
    %141 = arith.addf %138, %140 : vector<8x128xf32>
    %c13 = arith.constant 13 : index
    %142 = memref.load %arg4[%c13] : memref<36xf32, #tpu.memory_space<smem>>
    %143 = vector.broadcast %142 : f32 to vector<8x128xf32>
    %144 = arith.mulf %143, %31 : vector<8x128xf32>
    %145 = arith.addf %141, %144 : vector<8x128xf32>
    %c14 = arith.constant 14 : index
    %146 = memref.load %arg4[%c14] : memref<36xf32, #tpu.memory_space<smem>>
    %147 = vector.broadcast %146 : f32 to vector<8x128xf32>
    %148 = arith.mulf %147, %43 : vector<8x128xf32>
    %149 = arith.addf %145, %148 : vector<8x128xf32>
    %c15 = arith.constant 15 : index
    %150 = memref.load %arg4[%c15] : memref<36xf32, #tpu.memory_space<smem>>
    %151 = vector.broadcast %150 : f32 to vector<8x128xf32>
    %152 = arith.mulf %151, %55 : vector<8x128xf32>
    %153 = arith.addf %149, %152 : vector<8x128xf32>
    %c16 = arith.constant 16 : index
    %154 = memref.load %arg4[%c16] : memref<36xf32, #tpu.memory_space<smem>>
    %155 = vector.broadcast %154 : f32 to vector<8x128xf32>
    %156 = arith.mulf %155, %67 : vector<8x128xf32>
    %157 = arith.addf %153, %156 : vector<8x128xf32>
    %c17 = arith.constant 17 : index
    %158 = memref.load %arg4[%c17] : memref<36xf32, #tpu.memory_space<smem>>
    %159 = vector.broadcast %158 : f32 to vector<8x128xf32>
    %160 = arith.mulf %159, %79 : vector<8x128xf32>
    %161 = arith.addf %157, %160 : vector<8x128xf32>
    %cst_40 = arith.constant 0.000000e+00 : f32
    %162 = vector.broadcast %cst_40 : f32 to vector<8x128xf32>
    %163 = arith.maximumf %161, %162 : vector<8x128xf32>
    %c18 = arith.constant 18 : index
    %164 = memref.load %arg4[%c18] : memref<36xf32, #tpu.memory_space<smem>>
    %165 = vector.broadcast %164 : f32 to vector<8x128xf32>
    %166 = arith.mulf %165, %19 : vector<8x128xf32>
    %c3_41 = arith.constant 3 : index
    %167 = memref.load %arg5[%c3_41] : memref<6xf32, #tpu.memory_space<smem>>
    %168 = vector.broadcast %167 : f32 to vector<8x128xf32>
    %169 = arith.addf %166, %168 : vector<8x128xf32>
    %c19 = arith.constant 19 : index
    %170 = memref.load %arg4[%c19] : memref<36xf32, #tpu.memory_space<smem>>
    %171 = vector.broadcast %170 : f32 to vector<8x128xf32>
    %172 = arith.mulf %171, %31 : vector<8x128xf32>
    %173 = arith.addf %169, %172 : vector<8x128xf32>
    %c20 = arith.constant 20 : index
    %174 = memref.load %arg4[%c20] : memref<36xf32, #tpu.memory_space<smem>>
    %175 = vector.broadcast %174 : f32 to vector<8x128xf32>
    %176 = arith.mulf %175, %43 : vector<8x128xf32>
    %177 = arith.addf %173, %176 : vector<8x128xf32>
    %c21 = arith.constant 21 : index
    %178 = memref.load %arg4[%c21] : memref<36xf32, #tpu.memory_space<smem>>
    %179 = vector.broadcast %178 : f32 to vector<8x128xf32>
    %180 = arith.mulf %179, %55 : vector<8x128xf32>
    %181 = arith.addf %177, %180 : vector<8x128xf32>
    %c22 = arith.constant 22 : index
    %182 = memref.load %arg4[%c22] : memref<36xf32, #tpu.memory_space<smem>>
    %183 = vector.broadcast %182 : f32 to vector<8x128xf32>
    %184 = arith.mulf %183, %67 : vector<8x128xf32>
    %185 = arith.addf %181, %184 : vector<8x128xf32>
    %c23 = arith.constant 23 : index
    %186 = memref.load %arg4[%c23] : memref<36xf32, #tpu.memory_space<smem>>
    %187 = vector.broadcast %186 : f32 to vector<8x128xf32>
    %188 = arith.mulf %187, %79 : vector<8x128xf32>
    %189 = arith.addf %185, %188 : vector<8x128xf32>
    %cst_42 = arith.constant 0.000000e+00 : f32
    %190 = vector.broadcast %cst_42 : f32 to vector<8x128xf32>
    %191 = arith.maximumf %189, %190 : vector<8x128xf32>
    %c24 = arith.constant 24 : index
    %192 = memref.load %arg4[%c24] : memref<36xf32, #tpu.memory_space<smem>>
    %193 = vector.broadcast %192 : f32 to vector<8x128xf32>
    %194 = arith.mulf %193, %19 : vector<8x128xf32>
    %c4_43 = arith.constant 4 : index
    %195 = memref.load %arg5[%c4_43] : memref<6xf32, #tpu.memory_space<smem>>
    %196 = vector.broadcast %195 : f32 to vector<8x128xf32>
    %197 = arith.addf %194, %196 : vector<8x128xf32>
    %c25 = arith.constant 25 : index
    %198 = memref.load %arg4[%c25] : memref<36xf32, #tpu.memory_space<smem>>
    %199 = vector.broadcast %198 : f32 to vector<8x128xf32>
    %200 = arith.mulf %199, %31 : vector<8x128xf32>
    %201 = arith.addf %197, %200 : vector<8x128xf32>
    %c26 = arith.constant 26 : index
    %202 = memref.load %arg4[%c26] : memref<36xf32, #tpu.memory_space<smem>>
    %203 = vector.broadcast %202 : f32 to vector<8x128xf32>
    %204 = arith.mulf %203, %43 : vector<8x128xf32>
    %205 = arith.addf %201, %204 : vector<8x128xf32>
    %c27 = arith.constant 27 : index
    %206 = memref.load %arg4[%c27] : memref<36xf32, #tpu.memory_space<smem>>
    %207 = vector.broadcast %206 : f32 to vector<8x128xf32>
    %208 = arith.mulf %207, %55 : vector<8x128xf32>
    %209 = arith.addf %205, %208 : vector<8x128xf32>
    %c28 = arith.constant 28 : index
    %210 = memref.load %arg4[%c28] : memref<36xf32, #tpu.memory_space<smem>>
    %211 = vector.broadcast %210 : f32 to vector<8x128xf32>
    %212 = arith.mulf %211, %67 : vector<8x128xf32>
    %213 = arith.addf %209, %212 : vector<8x128xf32>
    %c29 = arith.constant 29 : index
    %214 = memref.load %arg4[%c29] : memref<36xf32, #tpu.memory_space<smem>>
    %215 = vector.broadcast %214 : f32 to vector<8x128xf32>
    %216 = arith.mulf %215, %79 : vector<8x128xf32>
    %217 = arith.addf %213, %216 : vector<8x128xf32>
    %cst_44 = arith.constant 0.000000e+00 : f32
    %218 = vector.broadcast %cst_44 : f32 to vector<8x128xf32>
    %219 = arith.maximumf %217, %218 : vector<8x128xf32>
    %c30 = arith.constant 30 : index
    %220 = memref.load %arg4[%c30] : memref<36xf32, #tpu.memory_space<smem>>
    %221 = vector.broadcast %220 : f32 to vector<8x128xf32>
    %222 = arith.mulf %221, %19 : vector<8x128xf32>
    %c5_45 = arith.constant 5 : index
    %223 = memref.load %arg5[%c5_45] : memref<6xf32, #tpu.memory_space<smem>>
    %224 = vector.broadcast %223 : f32 to vector<8x128xf32>
    %225 = arith.addf %222, %224 : vector<8x128xf32>
    %c31 = arith.constant 31 : index
    %226 = memref.load %arg4[%c31] : memref<36xf32, #tpu.memory_space<smem>>
    %227 = vector.broadcast %226 : f32 to vector<8x128xf32>
    %228 = arith.mulf %227, %31 : vector<8x128xf32>
    %229 = arith.addf %225, %228 : vector<8x128xf32>
    %c32 = arith.constant 32 : index
    %230 = memref.load %arg4[%c32] : memref<36xf32, #tpu.memory_space<smem>>
    %231 = vector.broadcast %230 : f32 to vector<8x128xf32>
    %232 = arith.mulf %231, %43 : vector<8x128xf32>
    %233 = arith.addf %229, %232 : vector<8x128xf32>
    %c33 = arith.constant 33 : index
    %234 = memref.load %arg4[%c33] : memref<36xf32, #tpu.memory_space<smem>>
    %235 = vector.broadcast %234 : f32 to vector<8x128xf32>
    %236 = arith.mulf %235, %55 : vector<8x128xf32>
    %237 = arith.addf %233, %236 : vector<8x128xf32>
    %c34 = arith.constant 34 : index
    %238 = memref.load %arg4[%c34] : memref<36xf32, #tpu.memory_space<smem>>
    %239 = vector.broadcast %238 : f32 to vector<8x128xf32>
    %240 = arith.mulf %239, %67 : vector<8x128xf32>
    %241 = arith.addf %237, %240 : vector<8x128xf32>
    %c35 = arith.constant 35 : index
    %242 = memref.load %arg4[%c35] : memref<36xf32, #tpu.memory_space<smem>>
    %243 = vector.broadcast %242 : f32 to vector<8x128xf32>
    %244 = arith.mulf %243, %79 : vector<8x128xf32>
    %245 = arith.addf %241, %244 : vector<8x128xf32>
    %cst_46 = arith.constant 0.000000e+00 : f32
    %246 = vector.broadcast %cst_46 : f32 to vector<8x128xf32>
    %247 = arith.maximumf %245, %246 : vector<8x128xf32>
    %c0_47 = arith.constant 0 : index
    %248 = memref.load %arg6[%c0_47] : memref<36xf32, #tpu.memory_space<smem>>
    %249 = vector.broadcast %248 : f32 to vector<8x128xf32>
    %250 = arith.mulf %249, %107 : vector<8x128xf32>
    %c0_48 = arith.constant 0 : index
    %251 = memref.load %arg7[%c0_48] : memref<6xf32, #tpu.memory_space<smem>>
    %252 = vector.broadcast %251 : f32 to vector<8x128xf32>
    %253 = arith.addf %250, %252 : vector<8x128xf32>
    %c1_49 = arith.constant 1 : index
    %254 = memref.load %arg6[%c1_49] : memref<36xf32, #tpu.memory_space<smem>>
    %255 = vector.broadcast %254 : f32 to vector<8x128xf32>
    %256 = arith.mulf %255, %135 : vector<8x128xf32>
    %257 = arith.addf %253, %256 : vector<8x128xf32>
    %c2_50 = arith.constant 2 : index
    %258 = memref.load %arg6[%c2_50] : memref<36xf32, #tpu.memory_space<smem>>
    %259 = vector.broadcast %258 : f32 to vector<8x128xf32>
    %260 = arith.mulf %259, %163 : vector<8x128xf32>
    %261 = arith.addf %257, %260 : vector<8x128xf32>
    %c3_51 = arith.constant 3 : index
    %262 = memref.load %arg6[%c3_51] : memref<36xf32, #tpu.memory_space<smem>>
    %263 = vector.broadcast %262 : f32 to vector<8x128xf32>
    %264 = arith.mulf %263, %191 : vector<8x128xf32>
    %265 = arith.addf %261, %264 : vector<8x128xf32>
    %c4_52 = arith.constant 4 : index
    %266 = memref.load %arg6[%c4_52] : memref<36xf32, #tpu.memory_space<smem>>
    %267 = vector.broadcast %266 : f32 to vector<8x128xf32>
    %268 = arith.mulf %267, %219 : vector<8x128xf32>
    %269 = arith.addf %265, %268 : vector<8x128xf32>
    %c5_53 = arith.constant 5 : index
    %270 = memref.load %arg6[%c5_53] : memref<36xf32, #tpu.memory_space<smem>>
    %271 = vector.broadcast %270 : f32 to vector<8x128xf32>
    %272 = arith.mulf %271, %247 : vector<8x128xf32>
    %273 = arith.addf %269, %272 : vector<8x128xf32>
    %274 = math.absf %273 : vector<8x128xf32>
    %c6_54 = arith.constant 6 : index
    %275 = memref.load %arg6[%c6_54] : memref<36xf32, #tpu.memory_space<smem>>
    %276 = vector.broadcast %275 : f32 to vector<8x128xf32>
    %277 = arith.mulf %276, %107 : vector<8x128xf32>
    %c1_55 = arith.constant 1 : index
    %278 = memref.load %arg7[%c1_55] : memref<6xf32, #tpu.memory_space<smem>>
    %279 = vector.broadcast %278 : f32 to vector<8x128xf32>
    %280 = arith.addf %277, %279 : vector<8x128xf32>
    %c7_56 = arith.constant 7 : index
    %281 = memref.load %arg6[%c7_56] : memref<36xf32, #tpu.memory_space<smem>>
    %282 = vector.broadcast %281 : f32 to vector<8x128xf32>
    %283 = arith.mulf %282, %135 : vector<8x128xf32>
    %284 = arith.addf %280, %283 : vector<8x128xf32>
    %c8_57 = arith.constant 8 : index
    %285 = memref.load %arg6[%c8_57] : memref<36xf32, #tpu.memory_space<smem>>
    %286 = vector.broadcast %285 : f32 to vector<8x128xf32>
    %287 = arith.mulf %286, %163 : vector<8x128xf32>
    %288 = arith.addf %284, %287 : vector<8x128xf32>
    %c9_58 = arith.constant 9 : index
    %289 = memref.load %arg6[%c9_58] : memref<36xf32, #tpu.memory_space<smem>>
    %290 = vector.broadcast %289 : f32 to vector<8x128xf32>
    %291 = arith.mulf %290, %191 : vector<8x128xf32>
    %292 = arith.addf %288, %291 : vector<8x128xf32>
    %c10_59 = arith.constant 10 : index
    %293 = memref.load %arg6[%c10_59] : memref<36xf32, #tpu.memory_space<smem>>
    %294 = vector.broadcast %293 : f32 to vector<8x128xf32>
    %295 = arith.mulf %294, %219 : vector<8x128xf32>
    %296 = arith.addf %292, %295 : vector<8x128xf32>
    %c11_60 = arith.constant 11 : index
    %297 = memref.load %arg6[%c11_60] : memref<36xf32, #tpu.memory_space<smem>>
    %298 = vector.broadcast %297 : f32 to vector<8x128xf32>
    %299 = arith.mulf %298, %247 : vector<8x128xf32>
    %300 = arith.addf %296, %299 : vector<8x128xf32>
    %301 = math.absf %300 : vector<8x128xf32>
    %c12_61 = arith.constant 12 : index
    %302 = memref.load %arg6[%c12_61] : memref<36xf32, #tpu.memory_space<smem>>
    %303 = vector.broadcast %302 : f32 to vector<8x128xf32>
    %304 = arith.mulf %303, %107 : vector<8x128xf32>
    %c2_62 = arith.constant 2 : index
    %305 = memref.load %arg7[%c2_62] : memref<6xf32, #tpu.memory_space<smem>>
    %306 = vector.broadcast %305 : f32 to vector<8x128xf32>
    %307 = arith.addf %304, %306 : vector<8x128xf32>
    %c13_63 = arith.constant 13 : index
    %308 = memref.load %arg6[%c13_63] : memref<36xf32, #tpu.memory_space<smem>>
    %309 = vector.broadcast %308 : f32 to vector<8x128xf32>
    %310 = arith.mulf %309, %135 : vector<8x128xf32>
    %311 = arith.addf %307, %310 : vector<8x128xf32>
    %c14_64 = arith.constant 14 : index
    %312 = memref.load %arg6[%c14_64] : memref<36xf32, #tpu.memory_space<smem>>
    %313 = vector.broadcast %312 : f32 to vector<8x128xf32>
    %314 = arith.mulf %313, %163 : vector<8x128xf32>
    %315 = arith.addf %311, %314 : vector<8x128xf32>
    %c15_65 = arith.constant 15 : index
    %316 = memref.load %arg6[%c15_65] : memref<36xf32, #tpu.memory_space<smem>>
    %317 = vector.broadcast %316 : f32 to vector<8x128xf32>
    %318 = arith.mulf %317, %191 : vector<8x128xf32>
    %319 = arith.addf %315, %318 : vector<8x128xf32>
    %c16_66 = arith.constant 16 : index
    %320 = memref.load %arg6[%c16_66] : memref<36xf32, #tpu.memory_space<smem>>
    %321 = vector.broadcast %320 : f32 to vector<8x128xf32>
    %322 = arith.mulf %321, %219 : vector<8x128xf32>
    %323 = arith.addf %319, %322 : vector<8x128xf32>
    %c17_67 = arith.constant 17 : index
    %324 = memref.load %arg6[%c17_67] : memref<36xf32, #tpu.memory_space<smem>>
    %325 = vector.broadcast %324 : f32 to vector<8x128xf32>
    %326 = arith.mulf %325, %247 : vector<8x128xf32>
    %327 = arith.addf %323, %326 : vector<8x128xf32>
    %328 = math.absf %327 : vector<8x128xf32>
    %c18_68 = arith.constant 18 : index
    %329 = memref.load %arg6[%c18_68] : memref<36xf32, #tpu.memory_space<smem>>
    %330 = vector.broadcast %329 : f32 to vector<8x128xf32>
    %331 = arith.mulf %330, %107 : vector<8x128xf32>
    %c3_69 = arith.constant 3 : index
    %332 = memref.load %arg7[%c3_69] : memref<6xf32, #tpu.memory_space<smem>>
    %333 = vector.broadcast %332 : f32 to vector<8x128xf32>
    %334 = arith.addf %331, %333 : vector<8x128xf32>
    %c19_70 = arith.constant 19 : index
    %335 = memref.load %arg6[%c19_70] : memref<36xf32, #tpu.memory_space<smem>>
    %336 = vector.broadcast %335 : f32 to vector<8x128xf32>
    %337 = arith.mulf %336, %135 : vector<8x128xf32>
    %338 = arith.addf %334, %337 : vector<8x128xf32>
    %c20_71 = arith.constant 20 : index
    %339 = memref.load %arg6[%c20_71] : memref<36xf32, #tpu.memory_space<smem>>
    %340 = vector.broadcast %339 : f32 to vector<8x128xf32>
    %341 = arith.mulf %340, %163 : vector<8x128xf32>
    %342 = arith.addf %338, %341 : vector<8x128xf32>
    %c21_72 = arith.constant 21 : index
    %343 = memref.load %arg6[%c21_72] : memref<36xf32, #tpu.memory_space<smem>>
    %344 = vector.broadcast %343 : f32 to vector<8x128xf32>
    %345 = arith.mulf %344, %191 : vector<8x128xf32>
    %346 = arith.addf %342, %345 : vector<8x128xf32>
    %c22_73 = arith.constant 22 : index
    %347 = memref.load %arg6[%c22_73] : memref<36xf32, #tpu.memory_space<smem>>
    %348 = vector.broadcast %347 : f32 to vector<8x128xf32>
    %349 = arith.mulf %348, %219 : vector<8x128xf32>
    %350 = arith.addf %346, %349 : vector<8x128xf32>
    %c23_74 = arith.constant 23 : index
    %351 = memref.load %arg6[%c23_74] : memref<36xf32, #tpu.memory_space<smem>>
    %352 = vector.broadcast %351 : f32 to vector<8x128xf32>
    %353 = arith.mulf %352, %247 : vector<8x128xf32>
    %354 = arith.addf %350, %353 : vector<8x128xf32>
    %355 = math.absf %354 : vector<8x128xf32>
    %c24_75 = arith.constant 24 : index
    %356 = memref.load %arg6[%c24_75] : memref<36xf32, #tpu.memory_space<smem>>
    %357 = vector.broadcast %356 : f32 to vector<8x128xf32>
    %358 = arith.mulf %357, %107 : vector<8x128xf32>
    %c4_76 = arith.constant 4 : index
    %359 = memref.load %arg7[%c4_76] : memref<6xf32, #tpu.memory_space<smem>>
    %360 = vector.broadcast %359 : f32 to vector<8x128xf32>
    %361 = arith.addf %358, %360 : vector<8x128xf32>
    %c25_77 = arith.constant 25 : index
    %362 = memref.load %arg6[%c25_77] : memref<36xf32, #tpu.memory_space<smem>>
    %363 = vector.broadcast %362 : f32 to vector<8x128xf32>
    %364 = arith.mulf %363, %135 : vector<8x128xf32>
    %365 = arith.addf %361, %364 : vector<8x128xf32>
    %c26_78 = arith.constant 26 : index
    %366 = memref.load %arg6[%c26_78] : memref<36xf32, #tpu.memory_space<smem>>
    %367 = vector.broadcast %366 : f32 to vector<8x128xf32>
    %368 = arith.mulf %367, %163 : vector<8x128xf32>
    %369 = arith.addf %365, %368 : vector<8x128xf32>
    %c27_79 = arith.constant 27 : index
    %370 = memref.load %arg6[%c27_79] : memref<36xf32, #tpu.memory_space<smem>>
    %371 = vector.broadcast %370 : f32 to vector<8x128xf32>
    %372 = arith.mulf %371, %191 : vector<8x128xf32>
    %373 = arith.addf %369, %372 : vector<8x128xf32>
    %c28_80 = arith.constant 28 : index
    %374 = memref.load %arg6[%c28_80] : memref<36xf32, #tpu.memory_space<smem>>
    %375 = vector.broadcast %374 : f32 to vector<8x128xf32>
    %376 = arith.mulf %375, %219 : vector<8x128xf32>
    %377 = arith.addf %373, %376 : vector<8x128xf32>
    %c29_81 = arith.constant 29 : index
    %378 = memref.load %arg6[%c29_81] : memref<36xf32, #tpu.memory_space<smem>>
    %379 = vector.broadcast %378 : f32 to vector<8x128xf32>
    %380 = arith.mulf %379, %247 : vector<8x128xf32>
    %381 = arith.addf %377, %380 : vector<8x128xf32>
    %382 = math.absf %381 : vector<8x128xf32>
    %c30_82 = arith.constant 30 : index
    %383 = memref.load %arg6[%c30_82] : memref<36xf32, #tpu.memory_space<smem>>
    %384 = vector.broadcast %383 : f32 to vector<8x128xf32>
    %385 = arith.mulf %384, %107 : vector<8x128xf32>
    %c5_83 = arith.constant 5 : index
    %386 = memref.load %arg7[%c5_83] : memref<6xf32, #tpu.memory_space<smem>>
    %387 = vector.broadcast %386 : f32 to vector<8x128xf32>
    %388 = arith.addf %385, %387 : vector<8x128xf32>
    %c31_84 = arith.constant 31 : index
    %389 = memref.load %arg6[%c31_84] : memref<36xf32, #tpu.memory_space<smem>>
    %390 = vector.broadcast %389 : f32 to vector<8x128xf32>
    %391 = arith.mulf %390, %135 : vector<8x128xf32>
    %392 = arith.addf %388, %391 : vector<8x128xf32>
    %c32_85 = arith.constant 32 : index
    %393 = memref.load %arg6[%c32_85] : memref<36xf32, #tpu.memory_space<smem>>
    %394 = vector.broadcast %393 : f32 to vector<8x128xf32>
    %395 = arith.mulf %394, %163 : vector<8x128xf32>
    %396 = arith.addf %392, %395 : vector<8x128xf32>
    %c33_86 = arith.constant 33 : index
    %397 = memref.load %arg6[%c33_86] : memref<36xf32, #tpu.memory_space<smem>>
    %398 = vector.broadcast %397 : f32 to vector<8x128xf32>
    %399 = arith.mulf %398, %191 : vector<8x128xf32>
    %400 = arith.addf %396, %399 : vector<8x128xf32>
    %c34_87 = arith.constant 34 : index
    %401 = memref.load %arg6[%c34_87] : memref<36xf32, #tpu.memory_space<smem>>
    %402 = vector.broadcast %401 : f32 to vector<8x128xf32>
    %403 = arith.mulf %402, %219 : vector<8x128xf32>
    %404 = arith.addf %400, %403 : vector<8x128xf32>
    %c35_88 = arith.constant 35 : index
    %405 = memref.load %arg6[%c35_88] : memref<36xf32, #tpu.memory_space<smem>>
    %406 = vector.broadcast %405 : f32 to vector<8x128xf32>
    %407 = arith.mulf %406, %247 : vector<8x128xf32>
    %408 = arith.addf %404, %407 : vector<8x128xf32>
    %409 = math.absf %408 : vector<8x128xf32>
    %410 = tpu.reciprocal %7 {approx = true} : vector<8x128xf32> -> vector<8x128xf32>
    %411 = arith.mulf %7, %410 : vector<8x128xf32>
    %cst_89 = arith.constant 2.000000e+00 : f32
    %412 = vector.broadcast %cst_89 : f32 to vector<8x128xf32>
    %413 = arith.subf %412, %411 : vector<8x128xf32>
    %414 = arith.mulf %410, %413 : vector<8x128xf32>
    %cst_90 = arith.constant 0.00892857183 : f32
    %415 = vector.broadcast %cst_90 : f32 to vector<8x128xf32>
    %416 = arith.mulf %415, %301 : vector<8x128xf32>
    %cst_91 = arith.constant 0.714285731 : f32
    %417 = vector.broadcast %cst_91 : f32 to vector<8x128xf32>
    %418 = arith.addf %417, %416 : vector<8x128xf32>
    %419 = arith.mulf %418, %5 : vector<8x128xf32>
    %420 = arith.mulf %419, %414 : vector<8x128xf32>
    %421 = arith.mulf %420, %420 : vector<8x128xf32>
    %422 = arith.mulf %421, %421 : vector<8x128xf32>
    %423 = arith.mulf %422, %421 : vector<8x128xf32>
    %424 = arith.mulf %423, %423 : vector<8x128xf32>
    %425 = math.log %7 : vector<8x128xf32>
    %cst_92 = arith.constant 0.333333343 : f32
    %426 = vector.broadcast %cst_92 : f32 to vector<8x128xf32>
    %427 = arith.mulf %425, %426 : vector<8x128xf32>
    %428 = math.exp %427 : vector<8x128xf32>
    %429 = arith.subf %424, %423 : vector<8x128xf32>
    %430 = arith.mulf %274, %429 : vector<8x128xf32>
    %431 = arith.mulf %355, %428 : vector<8x128xf32>
    %432 = arith.addf %430, %431 : vector<8x128xf32>
    %433 = arith.mulf %7, %7 : vector<8x128xf32>
    %434 = arith.mulf %409, %433 : vector<8x128xf32>
    %435 = arith.addf %432, %434 : vector<8x128xf32>
    %cst_93 = arith.constant 1.000000e+01 : f32
    %436 = vector.broadcast %cst_93 : f32 to vector<8x128xf32>
    %437 = arith.minimumf %435, %436 : vector<8x128xf32>
    %438 = arith.mulf %382, %7 : vector<8x128xf32>
    %439 = arith.subf %437, %438 : vector<8x128xf32>
    %440 = arith.addf %439, %328 : vector<8x128xf32>
    %c0_94 = arith.constant 0 : index
    %c0_95 = arith.constant 0 : index
    %441 = vector.load %arg8[%c0_94, %c0_95] : memref<8x128xf32, #tpu.memory_space<vmem>>, vector<8x128xf32>
    tpu.vector_store %arg8[%c0_94, %c0_95], %440 {strides = array<i32>} : memref<8x128xf32, #tpu.memory_space<vmem>>, vector<8x128xf32>,
    return
  }
  func.func @transform_0(%arg0: i32) -> (i32, i32, i32) {
    %c0_i32 = arith.constant 0 : i32
    %c0_i32_0 = arith.constant 0 : i32
    %c0_i32_1 = arith.constant 0 : i32
    return %c0_i32, %arg0, %c0_i32_0 : i32, i32, i32
  }
  func.func @transform_1(%arg0: i32) -> i32 {
    %c0_i32 = arith.constant 0 : i32
    %c0_i32_0 = arith.constant 0 : i32
    return %c0_i32 : i32
  }
  func.func @transform_2(%arg0: i32) -> i32 {
    %c0_i32 = arith.constant 0 : i32
    %c0_i32_0 = arith.constant 0 : i32
    return %c0_i32 : i32
  }
  func.func @transform_3(%arg0: i32) -> i32 {
    %c0_i32 = arith.constant 0 : i32
    %c0_i32_0 = arith.constant 0 : i32
    return %c0_i32 : i32
  }
  func.func @transform_4(%arg0: i32) -> i32 {
    %c0_i32 = arith.constant 0 : i32
    %c0_i32_0 = arith.constant 0 : i32
    return %c0_i32 : i32
  }
  func.func @transform_5(%arg0: i32) -> i32 {
    %c0_i32 = arith.constant 0 : i32
    %c0_i32_0 = arith.constant 0 : i32
    return %c0_i32 : i32
  }
  func.func @transform_6(%arg0: i32) -> i32 {
    %c0_i32 = arith.constant 0 : i32
    %c0_i32_0 = arith.constant 0 : i32
    return %c0_i32 : i32
  }
  func.func @transform_7(%arg0: i32) -> (i32, i32) {
    %c0_i32 = arith.constant 0 : i32
    %c0_i32_0 = arith.constant 0 : i32
    return %arg0, %c0_i32 : i32, i32
  }
}

</mosaic_0001>

<llo_original>
// kernel: tpu_custom_call.1
$region0: #{tpu_custom_call.1}
  #allocation0 [shape = 'u32[]', space=smem, size = 0x4, offset = 0x4, fixed_abs, tag = 'smem constant byte address 0x4 - core index']
  #allocation1 [shape = 'u32[144,128]{1,0:T(1,128)}', space=vmem, size = 0x12000, scoped, tag = 'internal scratch']
  %s0 = inlined_call_operand.hbm [shape: f32[4,8,128], index: 0, kind: input, shape index: {}]
  %s1 = inlined_call_operand.vmem [shape: f32[12], index: 1, kind: input, shape index: {}]
  %s2 = inlined_call_operand.vmem [shape: f32[6], index: 2, kind: input, shape index: {}]
  %s3 = inlined_call_operand.vmem [shape: f32[36], index: 3, kind: input, shape index: {}]
  %s4 = inlined_call_operand.vmem [shape: f32[6], index: 4, kind: input, shape index: {}]
  %s5 = inlined_call_operand.vmem [shape: f32[36], index: 5, kind: input, shape index: {}]
  %s6 = inlined_call_operand.vmem [shape: f32[6], index: 6, kind: input, shape index: {}]
  %s7 = inlined_call_operand.hbm [shape: f32[8,128], index: 7, kind: output, shape index: {}]
  %s8 = sld [smem:[#allocation0]]
  $region66: #{tpu_custom_call.1} parent=0
    _
  %s10 = ssub.s32 1, %s8
  %s11 = scalar_select 0, %s10, %s8
  $region1: #{tpu_custom_call.1} parent=0
    #allocation2 [shape = 'u8[16384]{0}', space=vmem, size = 0x4000, scoped, tag = 'input window, operand 0, single buffered']
    #allocation3 [shape = 's32[1]{0}', space=sflag, size = 0x4, scoped, tag = 'scoped memory for tpu_custom_call.1']
    #allocation4 [shape = 's32[1]{0}', space=sflag, size = 0x4, scoped, tag = 'scoped memory for tpu_custom_call.1']
    #allocation5 [shape = 's32[1]{0}', space=sflag, size = 0x4, scoped, tag = 'scoped memory for tpu_custom_call.1']
    #allocation6 [shape = 'u8[512]{0}', space=smem, size = 0x200, scoped, tag = 'input window, operand 1, single buffered']
    #allocation7 [shape = 'u8[512]{0}', space=smem, size = 0x200, scoped, tag = 'input window, operand 2, single buffered']
    #allocation8 [shape = 's32[1]{0}', space=sflag, size = 0x4, scoped, tag = 'scoped memory for tpu_custom_call.1']
    #allocation9 [shape = 'u8[512]{0}', space=smem, size = 0x200, scoped, tag = 'input window, operand 3, single buffered']
    #allocation10 [shape = 'u8[512]{0}', space=smem, size = 0x200, scoped, tag = 'input window, operand 4, single buffered']
    #allocation11 [shape = 's32[1]{0}', space=sflag, size = 0x4, scoped, tag = 'scoped memory for tpu_custom_call.1']
    #allocation12 [shape = 'u8[512]{0}', space=smem, size = 0x200, scoped, tag = 'input window, operand 5, single buffered']
    #allocation13 [shape = 'u8[512]{0}', space=smem, size = 0x200, scoped, tag = 'input window, operand 6, single buffered']
    #allocation14 [shape = 's32[1]{0}', space=sflag, size = 0x4, scoped, tag = 'scoped memory for tpu_custom_call.1']
    #allocation15 [shape = 'u8[4096]{0}', space=vmem, size = 0x1000, scoped, tag = 'output window, operand 0, single buffered']
    %12 = vsyncpa [#allocation3], 0
    %13 = vsyncpa [#allocation5], 0
    %14 = vsyncpa [#allocation8], 0
    %15 = vsyncpa [#allocation11], 0
    %16 = vsyncpa [#allocation14], 0
    %17 = vsyncpa [#allocation4], 0
    // Predicated region
    $region2: #{tpu_custom_call.1} parent=1 // pred_check
      _
    $region3: #{tpu_custom_call.1} parent=1 // pred_check_branch
      %19 = sbr.rel (0) target = $region5
    $region4: #{tpu_custom_call.1} parent=1 // pred_region
      %s21 = ssub.s32 512, 512
      %22 = vsyncadd [#allocation3], %s21
      %s23 = sshll.u32 [#allocation2], 4
      %s24 = int_to_ptr.vmem [resolvable:$true] %s23
      %29 = dma.hbm_to_vmem [thread:$0]  %s0, 512, %s24, [#allocation3], 128, 128, 8
    $region5: #{tpu_custom_call.1} parent=1 // pred_fallthru
      _
    // Predicated region
    $region6: #{tpu_custom_call.1} parent=1 // pred_check
      _
    $region7: #{tpu_custom_call.1} parent=1 // pred_check_branch
      %31 = sbr.rel (0) target = $region9
    $region8: #{tpu_custom_call.1} parent=1 // pred_region
      %s33 = ssub.s32 16, 16
      %34 = vsyncadd [#allocation5], %s33
      %s36 = sshll.u32 %s1, 4
      %s37 = int_to_ptr.vmem [resolvable:$true] %s36
      %39 = dma.vmem_to_smem %s37, 16, [#allocation6], [#allocation5]
    $region9: #{tpu_custom_call.1} parent=1 // pred_fallthru
      _
    // Predicated region
    $region10: #{tpu_custom_call.1} parent=1 // pred_check
      _
    $region11: #{tpu_custom_call.1} parent=1 // pred_check_branch
      %41 = sbr.rel (0) target = $region13
    $region12: #{tpu_custom_call.1} parent=1 // pred_region
      %s43 = ssub.s32 16, 16
      %44 = vsyncadd [#allocation8], %s43
      %s46 = sshll.u32 %s2, 4
      %s47 = int_to_ptr.vmem [resolvable:$true] %s46
      %49 = dma.vmem_to_smem %s47, 16, [#allocation7], [#allocation8]
    $region13: #{tpu_custom_call.1} parent=1 // pred_fallthru
      _
    // Predicated region
    $region14: #{tpu_custom_call.1} parent=1 // pred_check
      _
    $region15: #{tpu_custom_call.1} parent=1 // pred_check_branch
      %51 = sbr.rel (0) target = $region17
    $region16: #{tpu_custom_call.1} parent=1 // pred_region
      %s53 = ssub.s32 16, 16
      %54 = vsyncadd [#allocation8], %s53
      %s56 = sshll.u32 %s3, 4
      %s57 = int_to_ptr.vmem [resolvable:$true] %s56
      %59 = dma.vmem_to_smem %s57, 16, [#allocation9], [#allocation8]
    $region17: #{tpu_custom_call.1} parent=1 // pred_fallthru
      _
    // Predicated region
    $region18: #{tpu_custom_call.1} parent=1 // pred_check
      _
    $region19: #{tpu_custom_call.1} parent=1 // pred_check_branch
      %61 = sbr.rel (0) target = $region21
    $region20: #{tpu_custom_call.1} parent=1 // pred_region
      %s63 = ssub.s32 16, 16
      %64 = vsyncadd [#allocation11], %s63
      %s66 = sshll.u32 %s4, 4
      %s67 = int_to_ptr.vmem [resolvable:$true] %s66
      %69 = dma.vmem_to_smem %s67, 16, [#allocation10], [#allocation11]
    $region21: #{tpu_custom_call.1} parent=1 // pred_fallthru
      _
    // Predicated region
    $region22: #{tpu_custom_call.1} parent=1 // pred_check
      _
    $region23: #{tpu_custom_call.1} parent=1 // pred_check_branch
      %71 = sbr.rel (0) target = $region25
    $region24: #{tpu_custom_call.1} parent=1 // pred_region
      %s73 = ssub.s32 16, 16
      %74 = vsyncadd [#allocation11], %s73
      %s76 = sshll.u32 %s5, 4
      %s77 = int_to_ptr.vmem [resolvable:$true] %s76
      %79 = dma.vmem_to_smem %s77, 16, [#allocation12], [#allocation11]
    $region25: #{tpu_custom_call.1} parent=1 // pred_fallthru
      _
    // Predicated region
    $region26: #{tpu_custom_call.1} parent=1 // pred_check
      _
    $region27: #{tpu_custom_call.1} parent=1 // pred_check_branch
      %81 = sbr.rel (0) target = $region29
    $region28: #{tpu_custom_call.1} parent=1 // pred_region
      %s83 = ssub.s32 16, 16
      %84 = vsyncadd [#allocation14], %s83
      %s86 = sshll.u32 %s6, 4
      %s87 = int_to_ptr.vmem [resolvable:$true] %s86
      %89 = dma.vmem_to_smem %s87, 16, [#allocation13], [#allocation14]
    $region29: #{tpu_custom_call.1} parent=1 // pred_fallthru
      _
    // Predicated region
    $region30: #{tpu_custom_call.1} parent=1 // pred_check
      _
    $region31: #{tpu_custom_call.1} parent=1 // pred_check_branch
      %91 = sbr.rel (0) target = $region33
    $region32: #{tpu_custom_call.1} parent=1 // pred_region
      %92 = dma.done [#allocation3], 512
    $region33: #{tpu_custom_call.1} parent=1 // pred_fallthru
      _
    // Predicated region
    $region34: #{tpu_custom_call.1} parent=1 // pred_check
      _
    $region35: #{tpu_custom_call.1} parent=1 // pred_check_branch
      %94 = sbr.rel (0) target = $region37
    $region36: #{tpu_custom_call.1} parent=1 // pred_region
      %95 = dma.done [#allocation5], 16
    $region37: #{tpu_custom_call.1} parent=1 // pred_fallthru
      _
    // Predicated region
    $region38: #{tpu_custom_call.1} parent=1 // pred_check
      _
    $region39: #{tpu_custom_call.1} parent=1 // pred_check_branch
      %97 = sbr.rel (0) target = $region41
    $region40: #{tpu_custom_call.1} parent=1 // pred_region
      %98 = dma.done [#allocation8], 16
    $region41: #{tpu_custom_call.1} parent=1 // pred_fallthru
      _
    // Predicated region
    $region42: #{tpu_custom_call.1} parent=1 // pred_check
      _
    $region43: #{tpu_custom_call.1} parent=1 // pred_check_branch
      %100 = sbr.rel (0) target = $region45
    $region44: #{tpu_custom_call.1} parent=1 // pred_region
      %101 = dma.done [#allocation8], 16
    $region45: #{tpu_custom_call.1} parent=1 // pred_fallthru
      _
    // Predicated region
    $region46: #{tpu_custom_call.1} parent=1 // pred_check
      _
    $region47: #{tpu_custom_call.1} parent=1 // pred_check_branch
      %103 = sbr.rel (0) target = $region49
    $region48: #{tpu_custom_call.1} parent=1 // pred_region
      %104 = dma.done [#allocation11], 16
    $region49: #{tpu_custom_call.1} parent=1 // pred_fallthru
      _
    // Predicated region
    $region50: #{tpu_custom_call.1} parent=1 // pred_check
      _
    $region51: #{tpu_custom_call.1} parent=1 // pred_check_branch
      %106 = sbr.rel (0) target = $region53
    $region52: #{tpu_custom_call.1} parent=1 // pred_region
      %107 = dma.done [#allocation11], 16
    $region53: #{tpu_custom_call.1} parent=1 // pred_fallthru
      _
    // Predicated region
    $region54: #{tpu_custom_call.1} parent=1 // pred_check
      _
    $region55: #{tpu_custom_call.1} parent=1 // pred_check_branch
      %109 = sbr.rel (0) target = $region57
    $region56: #{tpu_custom_call.1} parent=1 // pred_region
      %110 = dma.done [#allocation14], 16
    $region57: #{tpu_custom_call.1} parent=1 // pred_fallthru
      _
    %111 = sfence
    %v112 = vld [vmem:[#allocation2] sm:$0xff]
    %s113 = scalar_lea.vmem [#allocation2], 8
    %v114 = vld [vmem:[%s113] sm:$0xff]
    %s115 = scalar_lea.vmem [#allocation2], 16
    %v116 = vld [vmem:[%s115] sm:$0xff]
    %s117 = scalar_lea.vmem [#allocation2], 24
    %v118 = vld [vmem:[%s117] sm:$0xff]
    %s119 = sld [smem:[#allocation6]]
    %v120 = vstv %s119
    %v121 = vmul.f32 %v120, %v112
    %s122 = sld [smem:[#allocation6 + $0x1]]
    %v123 = vstv %s122
    %v124 = vmul.f32 %v123, %v114
    %v125 = vadd.f32 %v121, %v124
    %s126 = sld [smem:[#allocation7]]
    %v127 = vstv %s126
    %v128 = vadd.f32 %v125, %v127
    %v129 = vmax.f32 %v128, 0.0
    %s130 = sld [smem:[#allocation6 + $0x2]]
    %v131 = vstv %s130
    %v132 = vmul.f32 %v131, %v112
    %s133 = sld [smem:[#allocation6 + $0x3]]
    %v134 = vstv %s133
    %v135 = vmul.f32 %v134, %v114
    %v136 = vadd.f32 %v132, %v135
    %s137 = sld [smem:[#allocation7 + $0x1]]
    %v138 = vstv %s137
    %v139 = vadd.f32 %v136, %v138
    %v140 = vmax.f32 %v139, 0.0
    %s141 = sld [smem:[#allocation6 + $0x4]]
    %v142 = vstv %s141
    %v143 = vmul.f32 %v142, %v112
    %s144 = sld [smem:[#allocation6 + $0x5]]
    %v145 = vstv %s144
    %v146 = vmul.f32 %v145, %v114
    %v147 = vadd.f32 %v143, %v146
    %s148 = sld [smem:[#allocation7 + $0x2]]
    %v149 = vstv %s148
    %v150 = vadd.f32 %v147, %v149
    %v151 = vmax.f32 %v150, 0.0
    %s152 = sld [smem:[#allocation6 + $0x6]]
    %v153 = vstv %s152
    %v154 = vmul.f32 %v153, %v112
    %s155 = sld [smem:[#allocation6 + $0x7]]
    %v156 = vstv %s155
    %v157 = vmul.f32 %v156, %v114
    %v158 = vadd.f32 %v154, %v157
    %s159 = sld [smem:[#allocation7 + $0x3]]
    %v160 = vstv %s159
    %v161 = vadd.f32 %v158, %v160
    %v162 = vmax.f32 %v161, 0.0
    %s163 = sld [smem:[#allocation6 + $0x8]]
    %v164 = vstv %s163
    %v165 = vmul.f32 %v164, %v112
    %s166 = sld [smem:[#allocation6 + $0x9]]
    %v167 = vstv %s166
    %v168 = vmul.f32 %v167, %v114
    %v169 = vadd.f32 %v165, %v168
    %s170 = sld [smem:[#allocation7 + $0x4]]
    %v171 = vstv %s170
    %v172 = vadd.f32 %v169, %v171
    %v173 = vmax.f32 %v172, 0.0
    %s174 = sld [smem:[#allocation6 + $0xa]]
    %v175 = vstv %s174
    %v176 = vmul.f32 %v175, %v112
    %s177 = sld [smem:[#allocation6 + $0xb]]
    %v178 = vstv %s177
    %v179 = vmul.f32 %v178, %v114
    %v180 = vadd.f32 %v176, %v179
    %s181 = sld [smem:[#allocation7 + $0x5]]
    %v182 = vstv %s181
    %v183 = vadd.f32 %v180, %v182
    %v184 = vmax.f32 %v183, 0.0
    %s185 = sld [smem:[#allocation9]]
    %v186 = vstv %s185
    %v187 = vmul.f32 %v186, %v129
    %s188 = sld [smem:[#allocation10]]
    %v189 = vstv %s188
    %v190 = vadd.f32 %v187, %v189
    %s191 = sld [smem:[#allocation9 + $0x1]]
    %v192 = vstv %s191
    %v193 = vmul.f32 %v192, %v140
    %v194 = vadd.f32 %v190, %v193
    %s195 = sld [smem:[#allocation9 + $0x2]]
    %v196 = vstv %s195
    %v197 = vmul.f32 %v196, %v151
    %v198 = vadd.f32 %v194, %v197
    %s199 = sld [smem:[#allocation9 + $0x3]]
    %v200 = vstv %s199
    %v201 = vmul.f32 %v200, %v162
    %v202 = vadd.f32 %v198, %v201
    %s203 = sld [smem:[#allocation9 + $0x4]]
    %v204 = vstv %s203
    %v205 = vmul.f32 %v204, %v173
    %v206 = vadd.f32 %v202, %v205
    %s207 = sld [smem:[#allocation9 + $0x5]]
    %v208 = vstv %s207
    %v209 = vmul.f32 %v208, %v184
    %v210 = vadd.f32 %v206, %v209
    %v211 = vmax.f32 %v210, 0.0
    %s212 = sld [smem:[#allocation9 + $0x6]]
    %v213 = vstv %s212
    %v214 = vmul.f32 %v213, %v129
    %s215 = sld [smem:[#allocation10 + $0x1]]
    %v216 = vstv %s215
    %v217 = vadd.f32 %v214, %v216
    %s218 = sld [smem:[#allocation9 + $0x7]]
    %v219 = vstv %s218
    %v220 = vmul.f32 %v219, %v140
    %v221 = vadd.f32 %v217, %v220
    %s222 = sld [smem:[#allocation9 + $0x8]]
    %v223 = vstv %s222
    %v224 = vmul.f32 %v223, %v151
    %v225 = vadd.f32 %v221, %v224
    %s226 = sld [smem:[#allocation9 + $0x9]]
    %v227 = vstv %s226
    %v228 = vmul.f32 %v227, %v162
    %v229 = vadd.f32 %v225, %v228
    %s230 = sld [smem:[#allocation9 + $0xa]]
    %v231 = vstv %s230
    %v232 = vmul.f32 %v231, %v173
    %v233 = vadd.f32 %v229, %v232
    %s234 = sld [smem:[#allocation9 + $0xb]]
    %v235 = vstv %s234
    %v236 = vmul.f32 %v235, %v184
    %v237 = vadd.f32 %v233, %v236
    %v238 = vmax.f32 %v237, 0.0
    %s239 = sld [smem:[#allocation9 + $0xc]]
    %v240 = vstv %s239
    %v241 = vmul.f32 %v240, %v129
    %s242 = sld [smem:[#allocation10 + $0x2]]
    %v243 = vstv %s242
    %v244 = vadd.f32 %v241, %v243
    %s245 = sld [smem:[#allocation9 + $0xd]]
    %v246 = vstv %s245
    %v247 = vmul.f32 %v246, %v140
    %v248 = vadd.f32 %v244, %v247
    %s249 = sld [smem:[#allocation9 + $0xe]]
    %v250 = vstv %s249
    %v251 = vmul.f32 %v250, %v151
    %v252 = vadd.f32 %v248, %v251
    %s253 = sld [smem:[#allocation9 + $0xf]]
    %v254 = vstv %s253
    %v255 = vmul.f32 %v254, %v162
    %v256 = vadd.f32 %v252, %v255
    %s257 = sld [smem:[#allocation9 + $0x10]]
    %v258 = vstv %s257
    %v259 = vmul.f32 %v258, %v173
    %v260 = vadd.f32 %v256, %v259
    %s261 = sld [smem:[#allocation9 + $0x11]]
    %v262 = vstv %s261
    %v263 = vmul.f32 %v262, %v184
    %v264 = vadd.f32 %v260, %v263
    %v265 = vmax.f32 %v264, 0.0
    %s266 = sld [smem:[#allocation9 + $0x12]]
    %v267 = vstv %s266
    %v268 = vmul.f32 %v267, %v129
    %s269 = sld [smem:[#allocation10 + $0x3]]
    %v270 = vstv %s269
    %v271 = vadd.f32 %v268, %v270
    %s272 = sld [smem:[#allocation9 + $0x13]]
    %v273 = vstv %s272
    %v274 = vmul.f32 %v273, %v140
    %v275 = vadd.f32 %v271, %v274
    %s276 = sld [smem:[#allocation9 + $0x14]]
    %v277 = vstv %s276
    %v278 = vmul.f32 %v277, %v151
    %v279 = vadd.f32 %v275, %v278
    %s280 = sld [smem:[#allocation9 + $0x15]]
    %v281 = vstv %s280
    %v282 = vmul.f32 %v281, %v162
    %v283 = vadd.f32 %v279, %v282
    %s284 = sld [smem:[#allocation9 + $0x16]]
    %v285 = vstv %s284
    %v286 = vmul.f32 %v285, %v173
    %v287 = vadd.f32 %v283, %v286
    %s288 = sld [smem:[#allocation9 + $0x17]]
    %v289 = vstv %s288
    %v290 = vmul.f32 %v289, %v184
    %v291 = vadd.f32 %v287, %v290
    %v292 = vmax.f32 %v291, 0.0
    %s293 = sld [smem:[#allocation9 + $0x18]]
    %v294 = vstv %s293
    %v295 = vmul.f32 %v294, %v129
    %s296 = sld [smem:[#allocation10 + $0x4]]
    %v297 = vstv %s296
    %v298 = vadd.f32 %v295, %v297
    %s299 = sld [smem:[#allocation9 + $0x19]]
    %v300 = vstv %s299
    %v301 = vmul.f32 %v300, %v140
    %v302 = vadd.f32 %v298, %v301
    %s303 = sld [smem:[#allocation9 + $0x1a]]
    %v304 = vstv %s303
    %v305 = vmul.f32 %v304, %v151
    %v306 = vadd.f32 %v302, %v305
    %s307 = sld [smem:[#allocation9 + $0x1b]]
    %v308 = vstv %s307
    %v309 = vmul.f32 %v308, %v162
    %v310 = vadd.f32 %v306, %v309
    %s311 = sld [smem:[#allocation9 + $0x1c]]
    %v312 = vstv %s311
    %v313 = vmul.f32 %v312, %v173
    %v314 = vadd.f32 %v310, %v313
    %s315 = sld [smem:[#allocation9 + $0x1d]]
    %v316 = vstv %s315
    %v317 = vmul.f32 %v316, %v184
    %v318 = vadd.f32 %v314, %v317
    %v319 = vmax.f32 %v318, 0.0
    %s320 = sld [smem:[#allocation9 + $0x1e]]
    %v321 = vstv %s320
    %v322 = vmul.f32 %v321, %v129
    %s323 = sld [smem:[#allocation10 + $0x5]]
    %v324 = vstv %s323
    %v325 = vadd.f32 %v322, %v324
    %s326 = sld [smem:[#allocation9 + $0x1f]]
    %v327 = vstv %s326
    %v328 = vmul.f32 %v327, %v140
    %v329 = vadd.f32 %v325, %v328
    %s330 = sld [smem:[#allocation9 + $0x20]]
    %v331 = vstv %s330
    %v332 = vmul.f32 %v331, %v151
    %v333 = vadd.f32 %v329, %v332
    %s334 = sld [smem:[#allocation9 + $0x21]]
    %v335 = vstv %s334
    %v336 = vmul.f32 %v335, %v162
    %v337 = vadd.f32 %v333, %v336
    %s338 = sld [smem:[#allocation9 + $0x22]]
    %v339 = vstv %s338
    %v340 = vmul.f32 %v339, %v173
    %v341 = vadd.f32 %v337, %v340
    %s342 = sld [smem:[#allocation9 + $0x23]]
    %v343 = vstv %s342
    %v344 = vmul.f32 %v343, %v184
    %v345 = vadd.f32 %v341, %v344
    %v346 = vmax.f32 %v345, 0.0
    %s347 = sld [smem:[#allocation12]]
    %v348 = vstv %s347
    %v349 = vmul.f32 %v348, %v211
    %s350 = sld [smem:[#allocation13]]
    %v351 = vstv %s350
    %v352 = vadd.f32 %v349, %v351
    %s353 = sld [smem:[#allocation12 + $0x1]]
    %v354 = vstv %s353
    %v355 = vmul.f32 %v354, %v238
    %v356 = vadd.f32 %v352, %v355
    %s357 = sld [smem:[#allocation12 + $0x2]]
    %v358 = vstv %s357
    %v359 = vmul.f32 %v358, %v265
    %v360 = vadd.f32 %v356, %v359
    %s361 = sld [smem:[#allocation12 + $0x3]]
    %v362 = vstv %s361
    %v363 = vmul.f32 %v362, %v292
    %v364 = vadd.f32 %v360, %v363
    %s365 = sld [smem:[#allocation12 + $0x4]]
    %v366 = vstv %s365
    %v367 = vmul.f32 %v366, %v319
    %v368 = vadd.f32 %v364, %v367
    %s369 = sld [smem:[#allocation12 + $0x5]]
    %v370 = vstv %s369
    %v371 = vmul.f32 %v370, %v346
    %v372 = vadd.f32 %v368, %v371
    %v373 = vand.u32 2147483647, %v372
    %s374 = sld [smem:[#allocation12 + $0x6]]
    %v375 = vstv %s374
    %v376 = vmul.f32 %v375, %v211
    %s377 = sld [smem:[#allocation13 + $0x1]]
    %v378 = vstv %s377
    %v379 = vadd.f32 %v376, %v378
    %s380 = sld [smem:[#allocation12 + $0x7]]
    %v381 = vstv %s380
    %v382 = vmul.f32 %v381, %v238
    %v383 = vadd.f32 %v379, %v382
    %s384 = sld [smem:[#allocation12 + $0x8]]
    %v385 = vstv %s384
    %v386 = vmul.f32 %v385, %v265
    %v387 = vadd.f32 %v383, %v386
    %s388 = sld [smem:[#allocation12 + $0x9]]
    %v389 = vstv %s388
    %v390 = vmul.f32 %v389, %v292
    %v391 = vadd.f32 %v387, %v390
    %s392 = sld [smem:[#allocation12 + $0xa]]
    %v393 = vstv %s392
    %v394 = vmul.f32 %v393, %v319
    %v395 = vadd.f32 %v391, %v394
    %s396 = sld [smem:[#allocation12 + $0xb]]
    %v397 = vstv %s396
    %v398 = vmul.f32 %v397, %v346
    %v399 = vadd.f32 %v395, %v398
    %v400 = vand.u32 2147483647, %v399
    %s401 = sld [smem:[#allocation12 + $0xc]]
    %v402 = vstv %s401
    %v403 = vmul.f32 %v402, %v211
    %s404 = sld [smem:[#allocation13 + $0x2]]
    %v405 = vstv %s404
    %v406 = vadd.f32 %v403, %v405
    %s407 = sld [smem:[#allocation12 + $0xd]]
    %v408 = vstv %s407
    %v409 = vmul.f32 %v408, %v238
    %v410 = vadd.f32 %v406, %v409
    %s411 = sld [smem:[#allocation12 + $0xe]]
    %v412 = vstv %s411
    %v413 = vmul.f32 %v412, %v265
    %v414 = vadd.f32 %v410, %v413
    %s415 = sld [smem:[#allocation12 + $0xf]]
    %v416 = vstv %s415
    %v417 = vmul.f32 %v416, %v292
    %v418 = vadd.f32 %v414, %v417
    %s419 = sld [smem:[#allocation12 + $0x10]]
    %v420 = vstv %s419
    %v421 = vmul.f32 %v420, %v319
    %v422 = vadd.f32 %v418, %v421
    %s423 = sld [smem:[#allocation12 + $0x11]]
    %v424 = vstv %s423
    %v425 = vmul.f32 %v424, %v346
    %v426 = vadd.f32 %v422, %v425
    %v427 = vand.u32 2147483647, %v426
    %s428 = sld [smem:[#allocation12 + $0x12]]
    %v429 = vstv %s428
    %v430 = vmul.f32 %v429, %v211
    %s431 = sld [smem:[#allocation13 + $0x3]]
    %v432 = vstv %s431
    %v433 = vadd.f32 %v430, %v432
    %s434 = sld [smem:[#allocation12 + $0x13]]
    %v435 = vstv %s434
    %v436 = vmul.f32 %v435, %v238
    %v437 = vadd.f32 %v433, %v436
    %s438 = sld [smem:[#allocation12 + $0x14]]
    %v439 = vstv %s438
    %v440 = vmul.f32 %v439, %v265
    %v441 = vadd.f32 %v437, %v440
    %s442 = sld [smem:[#allocation12 + $0x15]]
    %v443 = vstv %s442
    %v444 = vmul.f32 %v443, %v292
    %v445 = vadd.f32 %v441, %v444
    %s446 = sld [smem:[#allocation12 + $0x16]]
    %v447 = vstv %s446
    %v448 = vmul.f32 %v447, %v319
    %v449 = vadd.f32 %v445, %v448
    %s450 = sld [smem:[#allocation12 + $0x17]]
    %v451 = vstv %s450
    %v452 = vmul.f32 %v451, %v346
    %v453 = vadd.f32 %v449, %v452
    %v454 = vand.u32 2147483647, %v453
    %s455 = sld [smem:[#allocation12 + $0x18]]
    %v456 = vstv %s455
    %v457 = vmul.f32 %v456, %v211
    %s458 = sld [smem:[#allocation13 + $0x4]]
    %v459 = vstv %s458
    %v460 = vadd.f32 %v457, %v459
    %s461 = sld [smem:[#allocation12 + $0x19]]
    %v462 = vstv %s461
    %v463 = vmul.f32 %v462, %v238
    %v464 = vadd.f32 %v460, %v463
    %s465 = sld [smem:[#allocation12 + $0x1a]]
    %v466 = vstv %s465
    %v467 = vmul.f32 %v466, %v265
    %v468 = vadd.f32 %v464, %v467
    %s469 = sld [smem:[#allocation12 + $0x1b]]
    %v470 = vstv %s469
    %v471 = vmul.f32 %v470, %v292
    %v472 = vadd.f32 %v468, %v471
    %s473 = sld [smem:[#allocation12 + $0x1c]]
    %v474 = vstv %s473
    %v475 = vmul.f32 %v474, %v319
    %v476 = vadd.f32 %v472, %v475
    %s477 = sld [smem:[#allocation12 + $0x1d]]
    %v478 = vstv %s477
    %v479 = vmul.f32 %v478, %v346
    %v480 = vadd.f32 %v476, %v479
    %v481 = vand.u32 2147483647, %v480
    %s482 = sld [smem:[#allocation12 + $0x1e]]
    %v483 = vstv %s482
    %v484 = vmul.f32 %v483, %v211
    %s485 = sld [smem:[#allocation13 + $0x5]]
    %v486 = vstv %s485
    %v487 = vadd.f32 %v484, %v486
    %s488 = sld [smem:[#allocation12 + $0x1f]]
    %v489 = vstv %s488
    %v490 = vmul.f32 %v489, %v238
    %v491 = vadd.f32 %v487, %v490
    %s492 = sld [smem:[#allocation12 + $0x20]]
    %v493 = vstv %s492
    %v494 = vmul.f32 %v493, %v265
    %v495 = vadd.f32 %v491, %v494
    %s496 = sld [smem:[#allocation12 + $0x21]]
    %v497 = vstv %s496
    %v498 = vmul.f32 %v497, %v292
    %v499 = vadd.f32 %v495, %v498
    %s500 = sld [smem:[#allocation12 + $0x22]]
    %v501 = vstv %s500
    %v502 = vmul.f32 %v501, %v319
    %v503 = vadd.f32 %v499, %v502
    %s504 = sld [smem:[#allocation12 + $0x23]]
    %v505 = vstv %s504
    %v506 = vmul.f32 %v505, %v346
    %v507 = vadd.f32 %v503, %v506
    %v508 = vand.u32 2147483647, %v507
    %v509 = vrcp.pop %v118
    %v510 = vmul.f32 %v118, %v509
    %v511 = vsub.f32 2.0, %v510
    %v512 = vmul.f32 %v509, %v511
    %v513 = vmul.f32 %v400, 0.008928572
    %v514 = vadd.f32 %v513, 0.71428573
    %v515 = vmul.f32 %v514, %v116
    %v516 = vmul.f32 %v515, %v512
    %v517 = vmul.f32 %v516, %v516
    %v518 = vmul.f32 %v517, %v517
    %v519 = vmul.f32 %v518, %v517
    %v520 = vmul.f32 %v519, %v519
    %v521 = vlog2.pop %v118
    %v522 = vmul.f32 %v521, 0.6931472
    %v523 = vmul.f32 %v522, 0.33333334
    %v524 = vmul.f32 %v523, 1.442695
    %v525 = vpow.pop %v524
    %v526 = vsub.f32 %v520, %v519
    %v527 = vmul.f32 %v373, %v526
    %v528 = vmul.f32 %v454, %v525
    %v529 = vadd.f32 %v527, %v528
    %v530 = vmul.f32 %v118, %v118
    %v531 = vmul.f32 %v508, %v530
    %v532 = vadd.f32 %v529, %v531
    %v533 = vmin.f32 %v532, 10.0
    %v534 = vmul.f32 %v481, %v118
    %v535 = vsub.f32 %v533, %v534
    %v536 = vadd.f32 %v535, %v427
    %537 = vst [vmem:[#allocation15] sm:$0xff] %v536
    // Predicated region
    $region58: #{tpu_custom_call.1} parent=1 // pred_check
      _
    $region59: #{tpu_custom_call.1} parent=1 // pred_check_branch
      %539 = sbr.rel (0) target = $region61
    $region60: #{tpu_custom_call.1} parent=1 // pred_region
      %s541 = ssub.s32 128, 128
      %542 = vsyncadd [#allocation4], %s541
      %s544 = sshll.u32 [#allocation15], 4
      %s545 = int_to_ptr.vmem [resolvable:$true] %s544
      %547 = dma.vmem_to_hbm [thread:$0]  %s545, 128, %s7, [#allocation4]
    $region61: #{tpu_custom_call.1} parent=1 // pred_fallthru
      _
    // Predicated region
    $region62: #{tpu_custom_call.1} parent=1 // pred_check
      _
    $region63: #{tpu_custom_call.1} parent=1 // pred_check_branch
      %549 = sbr.rel (0) target = $region65
    $region64: #{tpu_custom_call.1} parent=1 // pred_region
      %550 = dma.done [#allocation4], 128
    $region65: #{tpu_custom_call.1} parent=1 // pred_fallthru
      _
    %551 = vsyncpa [#allocation3], 1
    %552 = vsyncpa [#allocation4], 1
    %553 = vsyncpa [#allocation5], 1
    %554 = vsyncpa [#allocation8], 1
    %555 = vsyncpa [#allocation11], 1
    %556 = vsyncpa [#allocation14], 1

</llo_original>
